<compile_context>
chip_gen: v7x
topology: tpu7x:2x2x1
jax: 0.10.0
libtpu: 0.0.40
codegen_flags: <defaults>
</compile_context>

<pallas_src>
import functools
import math

import jax
import jax.numpy as jnp
from jax.experimental import pallas as pl
from jax.experimental.pallas import tpu as pltpu


def _rmsnorm_kernel(x_ref, w_ref, o_ref, *, eps: float):
    # x_ref: (TILE_ROWS, H) in input dtype; w_ref: (1, H) float32.
    # Per-row work (VPU mul, XLU lane-reduce, EUP rsqrt) hides under the HBM
    # DMA latency, so no compute restructuring is needed.
    x = x_ref[...].astype(jnp.float32)
    mean_sq = jnp.mean(x * x, axis=-1, keepdims=True)
    inv = jax.lax.rsqrt(mean_sq + eps)
    y = x * inv * (1.0 + w_ref[...])
    o_ref[...] = y.astype(o_ref.dtype)


def _choose_tile_rows(rows: int, hidden: int, dtype_bytes: int) -> int:
    """Pick a row-tile size: big enough to amortize per-step overhead,
    small enough for v7x's 64 MiB VMEM, packed to the sublane granularity."""
    if dtype_bytes >= 4:
        row_pack = 8
    elif dtype_bytes == 2:
        row_pack = 16
    else:
        row_pack = 32

    # Keep each (tile_rows, hidden) buffer <= ~4 MiB: with double-buffered
    # input + output tiles plus ~3 live f32 intermediates this stays < ~48 MiB
    # even on v7x (64 MiB VMEM per TensorCore).
    per_buf_budget = 4 * 1024 * 1024
    tile_rows = per_buf_budget // max(1, hidden * dtype_bytes)
    tile_rows = max(row_pack, min(1024, tile_rows))
    tile_rows = (tile_rows // row_pack) * row_pack

    # Don't tile bigger than the (row-packed) problem.
    rows_packed = pl.cdiv(rows, row_pack) * row_pack
    tile_rows = min(tile_rows, rows_packed)

    # Keep at least 2 grid steps when possible so the "parallel" grid axis can
    # be sharded across both v7x TensorCores (neutral on v5e/v6e).
    if rows_packed >= 2 * row_pack and pl.cdiv(rows, tile_rows) < 2:
        half = pl.cdiv(rows_packed, 2)
        tile_rows = max(row_pack, pl.cdiv(half, row_pack) * row_pack)
    return int(tile_rows)


def gemma_rmsnorm(x: jax.Array, weight: jax.Array, eps: float = 1e-6,
                  tile_rows: int | None = None) -> jax.Array:
    """RMSNorm over the last axis of x, Gemma-style (1 + weight) scaling."""
    orig_shape = x.shape
    hidden = orig_shape[-1]
    rows = math.prod(orig_shape[:-1]) if len(orig_shape) > 1 else 1
    dtype_bytes = jnp.dtype(x.dtype).itemsize

    if tile_rows is None:
        tile_rows = _choose_tile_rows(rows, hidden, dtype_bytes)

    x2d = x.reshape(rows, hidden)
    w2d = weight.astype(jnp.float32).reshape(1, hidden)

    # Pad rows to a multiple of tile_rows (padded rows normalize to finite
    # values and are sliced off afterwards).
    num_tiles = pl.cdiv(rows, tile_rows)
    rows_padded = num_tiles * tile_rows
    if rows_padded != rows:
        x2d = jnp.pad(x2d, ((0, rows_padded - rows), (0, 0)))

    # VMEM budget: double-buffered input + output tiles, ~3 live f32
    # intermediates, the weight row, plus headroom.
    tile_in_bytes = tile_rows * hidden * dtype_bytes
    f32_tile_bytes = tile_rows * hidden * 4
    vmem_limit = int(min(
        4 * tile_in_bytes + 3 * f32_tile_bytes + hidden * 4 + (4 << 20),
        100 * 1024 * 1024,
    ))

    cost = pl.CostEstimate(
        flops=3 * rows * hidden,
        transcendentals=rows,
        bytes_accessed=2 * rows * hidden * dtype_bytes + hidden * 4,
    )

    out2d = pl.pallas_call(
        functools.partial(_rmsnorm_kernel, eps=eps),
        out_shape=jax.ShapeDtypeStruct((rows_padded, hidden), x.dtype),
        grid_spec=pltpu.PrefetchScalarGridSpec(
            num_scalar_prefetch=0,
            grid=(num_tiles,),
            in_specs=[
                pl.BlockSpec((tile_rows, hidden), lambda i: (i, 0)),
                pl.BlockSpec((1, hidden), lambda i: (0, 0)),
            ],
            out_specs=pl.BlockSpec((tile_rows, hidden), lambda i: (i, 0)),
        ),
        compiler_params=pltpu.CompilerParams(
            dimension_semantics=("parallel",),
            vmem_limit_bytes=vmem_limit,
        ),
        cost_estimate=cost,
    )(x2d, w2d)

    if rows_padded != rows:
        out2d = out2d[:rows]
    return out2d.reshape(orig_shape)


def _reference(x, weight, eps):
    xf = x.astype(jnp.float32)
    ref = xf * jax.lax.rsqrt(jnp.mean(xf * xf, axis=-1, keepdims=True) + eps)
    return (ref * (1.0 + weight.astype(jnp.float32))).astype(x.dtype)


if __name__ == "__main__":
    key = jax.random.PRNGKey(0)
    kx, kw, kx2, kw2 = jax.random.split(key, 4)
    eps = 1e-6

    # Case 1: small Gemma-like shape, bf16 path (exercises upcast/downcast).
    batch, seq, hidden = 2, 8, 128
    x = jax.random.normal(kx, (batch, seq, hidden), dtype=jnp.float32)
    x = x.astype(jnp.bfloat16)
    weight = 0.1 * jax.random.normal(kw, (hidden,), dtype=jnp.float32)

    out = gemma_rmsnorm(x, weight, eps=eps)
    jax.block_until_ready(out)
    ref = _reference(x, weight, eps)
    assert out.shape == x.shape and out.dtype == x.dtype
    assert jnp.allclose(out.astype(jnp.float32), ref.astype(jnp.float32),
                        atol=1e-2, rtol=1e-2)

    # Case 2: row count not divisible by the tile (exercises padding + grid>=2).
    x2 = jax.random.normal(kx2, (3, 5, 256), dtype=jnp.float32)
    weight2 = 0.05 * jax.random.normal(kw2, (256,), dtype=jnp.float32)
    out2 = gemma_rmsnorm(x2, weight2, eps=eps)
    jax.block_until_ready(out2)
    ref2 = _reference(x2, weight2, eps)
    assert out2.shape == x2.shape and out2.dtype == x2.dtype
    assert jnp.allclose(out2, ref2, atol=1e-5, rtol=1e-5)

    print("KERNEL_OK")
</pallas_src>

<mosaic_0001>
module attributes {stable_mosaic.version = 11 : i64} {
  func.func @_rmsnorm_kernel(%arg0: i32, %arg1: memref<16x128xbf16, #tpu.memory_space<vmem>>, %arg2: memref<1x128xf32, #tpu.memory_space<vmem>>, %arg3: memref<16x128xbf16, #tpu.memory_space<vmem>>) attributes {dimension_semantics = [#tpu.dimension_semantics<parallel>], iteration_bounds = array<i64: 1>, scalar_prefetch = 0 : i64, scratch_operands = 0 : i64, tpu.core_type = #tpu.core_type<tc>, window_params = [{transform_indices = @transform_0, window_bounds = array<i64: 16, 128>}, {pipeline_mode = #tpu.pipeline_mode<synchronous>, transform_indices = @transform_1, window_bounds = array<i64: 1, 128>}, {transform_indices = @transform_2, window_bounds = array<i64: 16, 128>}]} {
    %c0 = arith.constant 0 : index
    %c0_0 = arith.constant 0 : index
    %0 = vector.load %arg1[%c0, %c0_0] : memref<16x128xbf16, #tpu.memory_space<vmem>>, vector<16x128xbf16>
    %1 = arith.extf %0 : vector<16x128xbf16> to vector<16x128xf32>
    %2 = arith.mulf %1, %1 : vector<16x128xf32>
    %cst = arith.constant dense<0.000000e+00> : vector<16xf32>
    %3 = vector.multi_reduction <add>, %2, %cst [1] : vector<16x128xf32> to vector<16xf32>
    %4 = vector.shape_cast %3 : vector<16xf32> to vector<16x1xf32>
    %cst_1 = arith.constant 1.280000e+02 : f32
    %5 = vector.broadcast %cst_1 : f32 to vector<16x1xf32>
    %6 = arith.divf %4, %5 : vector<16x1xf32>
    %cst_2 = arith.constant 9.99999997E-7 : f32
    %7 = vector.broadcast %cst_2 : f32 to vector<16x1xf32>
    %8 = arith.addf %6, %7 : vector<16x1xf32>
    %9 = math.rsqrt %8 : vector<16x1xf32>
    %10 = vector.broadcast %9 : vector<16x1xf32> to vector<16x128xf32>
    %11 = arith.mulf %1, %10 : vector<16x128xf32>
    %c0_3 = arith.constant 0 : index
    %c0_4 = arith.constant 0 : index
    %12 = vector.load %arg2[%c0_3, %c0_4] : memref<1x128xf32, #tpu.memory_space<vmem>>, vector<1x128xf32>
    %cst_5 = arith.constant 1.000000e+00 : f32
    %13 = vector.broadcast %cst_5 : f32 to vector<1x128xf32>
    %14 = arith.addf %13, %12 : vector<1x128xf32>
    %15 = vector.broadcast %14 : vector<1x128xf32> to vector<16x128xf32>
    %16 = arith.mulf %11, %15 : vector<16x128xf32>
    %17 = arith.truncf %16 : vector<16x128xf32> to vector<16x128xbf16>
    %c0_6 = arith.constant 0 : index
    %c0_7 = arith.constant 0 : index
    %18 = vector.load %arg3[%c0_6, %c0_7] : memref<16x128xbf16, #tpu.memory_space<vmem>>, vector<16x128xbf16>
    tpu.vector_store %arg3[%c0_6, %c0_7], %17 {strides = array<i32>} : memref<16x128xbf16, #tpu.memory_space<vmem>>, vector<16x128xbf16>,
    return
  }
  func.func @transform_0(%arg0: i32) -> (i32, i32) {
    %c0_i32 = arith.constant 0 : i32
    %c0_i32_0 = arith.constant 0 : i32
    return %arg0, %c0_i32 : i32, i32
  }
  func.func @transform_1(%arg0: i32) -> (i32, i32) {
    %c0_i32 = arith.constant 0 : i32
    %c0_i32_0 = arith.constant 0 : i32
    %c0_i32_1 = arith.constant 0 : i32
    return %c0_i32, %c0_i32_0 : i32, i32
  }
  func.func @transform_2(%arg0: i32) -> (i32, i32) {
    %c0_i32 = arith.constant 0 : i32
    %c0_i32_0 = arith.constant 0 : i32
    return %arg0, %c0_i32 : i32, i32
  }
}

</mosaic_0001>

<llo_original>
// kernel: tpu_custom_call.1
$region0: #{tpu_custom_call.1}
  #allocation0 [shape = 'u32[]', space=smem, size = 0x4, offset = 0x4, fixed_abs, tag = 'smem constant byte address 0x4 - core index']
  #allocation1 [shape = 'u32[144,128]{1,0:T(1,128)}', space=vmem, size = 0x12000, scoped, tag = 'internal scratch']
  %s0 = inlined_call_operand.hbm [shape: bf16[16,128], index: 0, kind: input, shape index: {}]
  %s1 = inlined_call_operand.vmem [shape: f32[1,128], index: 1, kind: input, shape index: {}]
  %s2 = inlined_call_operand.hbm [shape: bf16[16,128], index: 2, kind: output, shape index: {}]
  %s3 = sld [smem:[#allocation0]]
  $region22: #{tpu_custom_call.1} parent=0
    _
  %s5 = ssub.s32 1, %s3
  %s6 = scalar_select 0, %s5, %s3
  $region1: #{tpu_custom_call.1} parent=0
    #allocation2 [shape = 'u8[4096]{0}', space=vmem, size = 0x1000, scoped, tag = 'input window, operand 0, single buffered']
    #allocation3 [shape = 's32[1]{0}', space=sflag, size = 0x4, scoped, tag = 'scoped memory for tpu_custom_call.1']
    #allocation4 [shape = 's32[1]{0}', space=sflag, size = 0x4, scoped, tag = 'scoped memory for tpu_custom_call.1']
    #allocation5 [shape = 'u8[4096]{0}', space=vmem, size = 0x1000, scoped, tag = 'output window, operand 0, single buffered']
    %7 = vsyncpa [#allocation3], 0
    %8 = vsyncpa [#allocation4], 0
    // Predicated region
    $region2: #{tpu_custom_call.1} parent=1 // pred_check
      _
    $region3: #{tpu_custom_call.1} parent=1 // pred_check_branch
      %10 = sbr.rel (0) target = $region5
    $region4: #{tpu_custom_call.1} parent=1 // pred_region
      %s12 = ssub.s32 128, 128
      %13 = vsyncadd [#allocation3], %s12
      %s14 = sshll.u32 [#allocation2], 4
      %s15 = int_to_ptr.vmem [resolvable:$true] %s14
      %20 = dma.hbm_to_vmem [thread:$0]  %s0, 128, %s15, [#allocation3], 64, 64, 4
    $region5: #{tpu_custom_call.1} parent=1 // pred_fallthru
      _
    // Predicated region
    $region6: #{tpu_custom_call.1} parent=1 // pred_check
      _
    $region7: #{tpu_custom_call.1} parent=1 // pred_check_branch
      %22 = sbr.rel (0) target = $region9
    $region8: #{tpu_custom_call.1} parent=1 // pred_region
      _
    $region9: #{tpu_custom_call.1} parent=1 // pred_fallthru
      _
    // Predicated region
    $region10: #{tpu_custom_call.1} parent=1 // pred_check
      _
    $region11: #{tpu_custom_call.1} parent=1 // pred_check_branch
      %24 = sbr.rel (0) target = $region13
    $region12: #{tpu_custom_call.1} parent=1 // pred_region
      %25 = dma.done [#allocation3], 128
    $region13: #{tpu_custom_call.1} parent=1 // pred_fallthru
      _
    %v26 = vld [vmem:[#allocation2] sm:$0xf]
    %v27 = vld [vmem:[#allocation2 + $0x4] sm:$0xf]
    %v28 = vunpack.c.l.bf16 %v26
    %v29 = vunpack.c.l.bf16 %v27
    %v30 = vmul.f32 %v28, %v28
    %v31 = vmul.f32 %v29, %v29
    %32 = vadd.xlane.f32.xlu0 %v30
    %v33 = vpop.xlane.xlu0 %32
    %34 = vadd.xlane.f32.xlu0 %v31
    %v35 = vpop.xlane.xlu0 %34
    %v36 = vrcp.pop 128.0
    %v37 = vmul.f32 %v33, %v36
    %v38 = vmul.f32 %v35, %v36
    %v39 = vadd.f32 %v37, 1e-06
    %v40 = vadd.f32 %v38, 1e-06
    %v41 = vrsqrt.pop %v39
    %v42 = vrsqrt.pop %v40
    %v43 = vmul.f32 %v28, %v41
    %v44 = vmul.f32 %v29, %v42
    %v45 = vld [vmem:[%s1] sm:$0x1]
    %v46 = vadd.f32 %v45, 1.0
    %v48 = vlaneseq
    %v49 = vshrl.u32 %v48, 7
    %v50 = vsub.s32 0, %v49
    %v51 = vrot.slane %v46, %v50
    %v53 = vmul.f32 %v43, %v51
    %v54 = vmul.f32 %v44, %v51
    %v55 = vpack.c.bf16 %v54, %v53
    %v57 = vunpack.c.l.b16 %v55
    %v58 = vunpack.c.h.b16 %v55
    %v59 = vpack.c.b16 %v57, %v57
    %v60 = vpack.c.b16 %v58, %v58
    %63 = vst [vmem:[#allocation5] sm:$0xf] %v59
    %64 = vst [vmem:[#allocation5 + $0x4] sm:$0xf] %v60
    // Predicated region
    $region14: #{tpu_custom_call.1} parent=1 // pred_check
      _
    $region15: #{tpu_custom_call.1} parent=1 // pred_check_branch
      %66 = sbr.rel (0) target = $region17
    $region16: #{tpu_custom_call.1} parent=1 // pred_region
      %s68 = ssub.s32 128, 128
      %69 = vsyncadd [#allocation4], %s68
      %s70 = sshll.u32 [#allocation5], 4
      %s71 = int_to_ptr.vmem [resolvable:$true] %s70
      %76 = dma.vmem_to_hbm [thread:$0]  %s71, 128, %s2, [#allocation4], 64, 64, 4
    $region17: #{tpu_custom_call.1} parent=1 // pred_fallthru
      _
    // Predicated region
    $region18: #{tpu_custom_call.1} parent=1 // pred_check
      _
    $region19: #{tpu_custom_call.1} parent=1 // pred_check_branch
      %78 = sbr.rel (0) target = $region21
    $region20: #{tpu_custom_call.1} parent=1 // pred_region
      %79 = dma.done [#allocation4], 128
    $region21: #{tpu_custom_call.1} parent=1 // pred_fallthru
      _
    %80 = vsyncpa [#allocation3], 1
    %81 = vsyncpa [#allocation4], 1

</llo_original>
